<compile_context>
chip_gen: v5e
topology: v5e:2x2
jax: 0.10.0
libtpu: 0.0.40
codegen_flags: <defaults>
</compile_context>

<pallas_src>
import jax
import jax.numpy as jnp
from jax.experimental import pallas as pl
from jax.experimental.pallas import tpu as pltpu


def _round_up(n, m):
    return ((n + m - 1) // m) * m


def _tensorcores_per_chip():
    """2 TensorCores per chip on v7x (and megacore v4/v5p); 1 on v5e/v6e."""
    try:
        kind = jax.devices()[0].device_kind.lower()
    except Exception:
        return 1
    return 2 if any(tag in kind for tag in ("v7", "v4", "v5p")) else 1


def _choose_batch_tile(B, tb_max):
    """Pick (batch_tile, n_grid_steps).

    Single-TC chips: one big tile (up to tb_max) -- no pointless grid splits.
    2-TC chips: at least 2 steps and an *even* step count so both TensorCores
    get balanced work via the "parallel" grid axis.
    """
    Bm = _round_up(max(B, 1), 8)
    tb_max = max(8, _round_up(tb_max, 8))
    if _tensorcores_per_chip() >= 2 and Bm >= 16:
        n_steps = 2 * pl.cdiv(Bm, 2 * tb_max)          # even, >= 2
        tb = _round_up(pl.cdiv(Bm, n_steps), 8)
    else:
        tb = min(tb_max, Bm)
        n_steps = pl.cdiv(Bm, tb)
    return tb, n_steps


def _autoencoder_kernel(x_ref, w_enc_ref, b_enc_ref, w_dec_ref, b_dec_ref, o_ref):
    # Cast x to the matmul operand dtype in-kernel (free vs. an extra HBM pass).
    x = x_ref[...].astype(w_enc_ref.dtype)
    # Encoder: relu(x @ W_enc + b_enc)   (MXU matmul, f32 accumulation)
    h = jnp.dot(x, w_enc_ref[...], preferred_element_type=jnp.float32)
    h = jnp.maximum(h + b_enc_ref[...], 0.0)           # (tb, Ep) + (1, Ep), f32 epilogue
    # Decoder: sigmoid(h @ W_dec + b_dec)
    h = h.astype(w_dec_ref.dtype)
    y = jnp.dot(h, w_dec_ref[...], preferred_element_type=jnp.float32)
    y = y + b_dec_ref[...]                              # (tb, Dp) + (1, Dp), f32 epilogue
    o_ref[...] = jax.nn.sigmoid(y).astype(o_ref.dtype)


class AutoencoderPallas:
    """Fused Linear->ReLU->Linear->Sigmoid forward.

    Weights are stored pre-transposed vs. torch.nn.Linear so y = x @ W + b.
    Padding to lane-dense (multiples of 128) shapes and the optional bf16 cast
    are done ONCE here, not per forward call.
    """

    def __init__(self, w_enc, b_enc, w_dec, b_dec, *, use_bf16_matmul=False):
        D, E = w_enc.shape
        assert b_enc.shape == (E,)
        assert w_dec.shape == (E, D)
        assert b_dec.shape == (D,)
        self.D, self.E = D, E
        self.Dp, self.Ep = _round_up(D, 128), _round_up(E, 128)
        self.mm_dtype = jnp.bfloat16 if use_bf16_matmul else jnp.float32

        f32 = jnp.float32
        if (D, E) == (self.Dp, self.Ep):
            w_enc_p = w_enc.astype(f32)
            w_dec_p = w_dec.astype(f32)
            b_enc_p = b_enc.astype(f32).reshape(1, E)
            b_dec_p = b_dec.astype(f32).reshape(1, D)
        else:
            # Zero-padding is exact: padded lanes contribute nothing through zero
            # weights, and padded output columns are sliced off.
            w_enc_p = jnp.zeros((self.Dp, self.Ep), f32).at[:D, :E].set(w_enc.astype(f32))
            w_dec_p = jnp.zeros((self.Ep, self.Dp), f32).at[:E, :D].set(w_dec.astype(f32))
            b_enc_p = jnp.zeros((1, self.Ep), f32).at[0, :E].set(b_enc.astype(f32))
            b_dec_p = jnp.zeros((1, self.Dp), f32).at[0, :D].set(b_dec.astype(f32))

        self.w_enc = w_enc_p.astype(self.mm_dtype)
        self.w_dec = w_dec_p.astype(self.mm_dtype)
        self.b_enc = b_enc_p      # biases stay f32 (epilogue is f32)
        self.b_dec = b_dec_p

    def __call__(self, x, *, tb_max=1024, out_dtype=None):
        B, D = x.shape
        assert D == self.D
        Dp, Ep = self.Dp, self.Ep
        out_dtype = x.dtype if out_dtype is None else out_dtype

        tb, n_steps = _choose_batch_tile(B, tb_max)
        Bp = tb * n_steps

        aligned = (D == Dp) and (Bp == B)
        if aligned:
            x_in = x                                   # no pad copy, no output slice
        else:
            x_in = jnp.zeros((Bp, Dp), x.dtype).at[:B, :D].set(x)

        itemsize = lambda a: a.size * a.dtype.itemsize
        bytes_accessed = (itemsize(x_in) + itemsize(self.w_enc) + itemsize(self.w_dec)
                          + itemsize(self.b_enc) + itemsize(self.b_dec)
                          + Bp * Dp * jnp.dtype(out_dtype).itemsize)
        cost = pl.CostEstimate(
            flops=4 * Bp * Dp * Ep,                    # two matmuls
            transcendentals=Bp * Dp,                   # sigmoid
            bytes_accessed=bytes_accessed,
        )

        out = pl.pallas_call(
            _autoencoder_kernel,
            out_shape=jax.ShapeDtypeStruct((Bp, Dp), out_dtype),
            grid_spec=pltpu.PrefetchScalarGridSpec(
                num_scalar_prefetch=0,
                grid=(n_steps,),
                in_specs=[
                    pl.BlockSpec((tb, Dp), lambda i: (i, 0)),   # x tile over batch
                    pl.BlockSpec((Dp, Ep), lambda i: (0, 0)),   # encoder weight (resident)
                    pl.BlockSpec((1, Ep), lambda i: (0, 0)),    # encoder bias
                    pl.BlockSpec((Ep, Dp), lambda i: (0, 0)),   # decoder weight (resident)
                    pl.BlockSpec((1, Dp), lambda i: (0, 0)),    # decoder bias
                ],
                out_specs=pl.BlockSpec((tb, Dp), lambda i: (i, 0)),
            ),
            compiler_params=pltpu.CompilerParams(
                dimension_semantics=("parallel",),
            ),
            cost_estimate=cost,
        )(x_in, self.w_enc, self.b_enc, self.w_dec, self.b_dec)

        if aligned:
            return out
        return out[:B, :D]


if __name__ == "__main__":
    key = jax.random.PRNGKey(0)

    def ref_forward(x, w_enc, b_enc, w_dec, b_dec):
        return jax.nn.sigmoid(jnp.maximum(x @ w_enc + b_enc, 0.0) @ w_dec + b_dec)

    def make_inputs(k, B, D, E):
        kx, k1, k2, k3, k4 = jax.random.split(k, 5)
        x = jax.random.normal(kx, (B, D), dtype=jnp.float32)
        lim_e = 1.0 / (D ** 0.5)
        lim_d = 1.0 / (E ** 0.5)
        w_enc = jax.random.uniform(k1, (D, E), jnp.float32, -lim_e, lim_e)
        b_enc = jax.random.uniform(k2, (E,), jnp.float32, -lim_e, lim_e)
        w_dec = jax.random.uniform(k3, (E, D), jnp.float32, -lim_d, lim_d)
        b_dec = jax.random.uniform(k4, (D,), jnp.float32, -lim_d, lim_d)
        return x, w_enc, b_enc, w_dec, b_dec

    encoding_dim = 64

    # Case 1: aligned shapes (D multiple of 128) -> no pad copy of x, no output slice.
    ka, kb = jax.random.split(key)
    x1, we1, be1, wd1, bd1 = make_inputs(ka, 256, 128, encoding_dim)
    ae1 = AutoencoderPallas(we1, be1, wd1, bd1)           # f32 matmul path
    out1 = jax.block_until_ready(ae1(x1))
    ref1 = ref_forward(x1, we1, be1, wd1, bd1)
    assert out1.shape == (256, 128)
    assert jnp.allclose(out1, ref1, atol=1e-5, rtol=1e-5)

    # Case 2: non-tile-aligned shapes exercise the zero-padding path (D=100 -> 128).
    x2, we2, be2, wd2, bd2 = make_inputs(kb, 37, 100, encoding_dim)
    ae2 = AutoencoderPallas(we2, be2, wd2, bd2)
    out2 = jax.block_until_ready(ae2(x2))
    ref2 = ref_forward(x2, we2, be2, wd2, bd2)
    assert out2.shape == (37, 100)
    assert jnp.allclose(out2, ref2, atol=1e-5, rtol=1e-5)

    # Case 3: bf16 matmul operands (recommended default on v6e/v7x), relaxed tolerance.
    ae3 = AutoencoderPallas(we1, be1, wd1, bd1, use_bf16_matmul=True)
    out3 = jax.block_until_ready(ae3(x1))
    assert out3.shape == (256, 128)
    assert jnp.allclose(out3, ref1, atol=2e-2, rtol=2e-2)

    print("KERNEL_OK")
</pallas_src>

<mosaic_0001>
module attributes {stable_mosaic.version = 11 : i64} {
  func.func @_autoencoder_kernel(%arg0: i32, %arg1: memref<256x128xf32, #tpu.memory_space<vmem>>, %arg2: memref<128x128xf32, #tpu.memory_space<vmem>>, %arg3: memref<1x128xf32, #tpu.memory_space<vmem>>, %arg4: memref<128x128xf32, #tpu.memory_space<vmem>>, %arg5: memref<1x128xf32, #tpu.memory_space<vmem>>, %arg6: memref<256x128xf32, #tpu.memory_space<vmem>>) attributes {dimension_semantics = [#tpu.dimension_semantics<parallel>], iteration_bounds = array<i64: 1>, scalar_prefetch = 0 : i64, scratch_operands = 0 : i64, tpu.core_type = #tpu.core_type<tc>, window_params = [{transform_indices = @transform_0, window_bounds = array<i64: 256, 128>}, {pipeline_mode = #tpu.pipeline_mode<synchronous>, transform_indices = @transform_1, window_bounds = array<i64: 128, 128>}, {pipeline_mode = #tpu.pipeline_mode<synchronous>, transform_indices = @transform_2, window_bounds = array<i64: 1, 128>}, {pipeline_mode = #tpu.pipeline_mode<synchronous>, transform_indices = @transform_3, window_bounds = array<i64: 128, 128>}, {pipeline_mode = #tpu.pipeline_mode<synchronous>, transform_indices = @transform_4, window_bounds = array<i64: 1, 128>}, {transform_indices = @transform_5, window_bounds = array<i64: 256, 128>}]} {
    %c0 = arith.constant 0 : index
    %c0_0 = arith.constant 0 : index
    %0 = vector.load %arg1[%c0, %c0_0] : memref<256x128xf32, #tpu.memory_space<vmem>>, vector<256x128xf32>
    %c0_1 = arith.constant 0 : index
    %c0_2 = arith.constant 0 : index
    %1 = vector.load %arg2[%c0_1, %c0_2] : memref<128x128xf32, #tpu.memory_space<vmem>>, vector<128x128xf32>
    %cst = arith.constant dense<0.000000e+00> : vector<256x128xf32>
    %2 = tpu.matmul %0, %1, %cst {dimension_numbers = #tpu.dot_dimension_numbers<[1], [0], [0], [1], [0, 0, 1, 1], [], []>} : vector<256x128xf32>, vector<128x128xf32>, vector<256x128xf32> -> vector<256x128xf32>
    %c0_3 = arith.constant 0 : index
    %c0_4 = arith.constant 0 : index
    %3 = vector.load %arg3[%c0_3, %c0_4] : memref<1x128xf32, #tpu.memory_space<vmem>>, vector<1x128xf32>
    %4 = vector.broadcast %3 : vector<1x128xf32> to vector<256x128xf32>
    %5 = arith.addf %2, %4 : vector<256x128xf32>
    %cst_5 = arith.constant 0.000000e+00 : f32
    %6 = vector.broadcast %cst_5 : f32 to vector<256x128xf32>
    %7 = arith.maximumf %5, %6 : vector<256x128xf32>
    %c0_6 = arith.constant 0 : index
    %c0_7 = arith.constant 0 : index
    %8 = vector.load %arg4[%c0_6, %c0_7] : memref<128x128xf32, #tpu.memory_space<vmem>>, vector<128x128xf32>
    %cst_8 = arith.constant dense<0.000000e+00> : vector<256x128xf32>
    %9 = tpu.matmul %7, %8, %cst_8 {dimension_numbers = #tpu.dot_dimension_numbers<[1], [0], [0], [1], [0, 0, 1, 1], [], []>} : vector<256x128xf32>, vector<128x128xf32>, vector<256x128xf32> -> vector<256x128xf32>
    %c0_9 = arith.constant 0 : index
    %c0_10 = arith.constant 0 : index
    %10 = vector.load %arg5[%c0_9, %c0_10] : memref<1x128xf32, #tpu.memory_space<vmem>>, vector<1x128xf32>
    %11 = vector.broadcast %10 : vector<1x128xf32> to vector<256x128xf32>
    %12 = arith.addf %9, %11 : vector<256x128xf32>
    %13 = arith.negf %12 : vector<256x128xf32>
    %14 = math.exp %13 : vector<256x128xf32>
    %cst_11 = arith.constant 1.000000e+00 : f32
    %15 = vector.broadcast %cst_11 : f32 to vector<256x128xf32>
    %16 = arith.addf %15, %14 : vector<256x128xf32>
    %17 = arith.divf %15, %16 : vector<256x128xf32>
    %c0_12 = arith.constant 0 : index
    %c0_13 = arith.constant 0 : index
    %18 = vector.load %arg6[%c0_12, %c0_13] : memref<256x128xf32, #tpu.memory_space<vmem>>, vector<256x128xf32>
    tpu.vector_store %arg6[%c0_12, %c0_13], %17 {strides = array<i32>} : memref<256x128xf32, #tpu.memory_space<vmem>>, vector<256x128xf32>,
    return
  }
  func.func @transform_0(%arg0: i32) -> (i32, i32) {
    %c0_i32 = arith.constant 0 : i32
    %c0_i32_0 = arith.constant 0 : i32
    return %arg0, %c0_i32 : i32, i32
  }
  func.func @transform_1(%arg0: i32) -> (i32, i32) {
    %c0_i32 = arith.constant 0 : i32
    %c0_i32_0 = arith.constant 0 : i32
    %c0_i32_1 = arith.constant 0 : i32
    return %c0_i32, %c0_i32_0 : i32, i32
  }
  func.func @transform_2(%arg0: i32) -> (i32, i32) {
    %c0_i32 = arith.constant 0 : i32
    %c0_i32_0 = arith.constant 0 : i32
    %c0_i32_1 = arith.constant 0 : i32
    return %c0_i32, %c0_i32_0 : i32, i32
  }
  func.func @transform_3(%arg0: i32) -> (i32, i32) {
    %c0_i32 = arith.constant 0 : i32
    %c0_i32_0 = arith.constant 0 : i32
    %c0_i32_1 = arith.constant 0 : i32
    return %c0_i32, %c0_i32_0 : i32, i32
  }
  func.func @transform_4(%arg0: i32) -> (i32, i32) {
    %c0_i32 = arith.constant 0 : i32
    %c0_i32_0 = arith.constant 0 : i32
    %c0_i32_1 = arith.constant 0 : i32
    return %c0_i32, %c0_i32_0 : i32, i32
  }
  func.func @transform_5(%arg0: i32) -> (i32, i32) {
    %c0_i32 = arith.constant 0 : i32
    %c0_i32_0 = arith.constant 0 : i32
    return %arg0, %c0_i32 : i32, i32
  }
}

</mosaic_0001>

<llo_original>
// kernel: tpu_custom_call.1
$region0: #{tpu_custom_call.1}
  #allocation0 [shape = 'u32[]', space=smem, size = 0x4, offset = 0x4, fixed_abs, tag = 'smem constant byte address 0x4 - core index']
  #allocation1 [shape = 'u32[72,128]{1,0:T(1,128)}', space=vmem, size = 0x9000, scoped, tag = 'internal scratch']
  %s0 = inlined_call_operand.hbm [shape: f32[256,128], index: 0, kind: input, shape index: {}]
  %s1 = inlined_call_operand.hbm [shape: f32[128,128], index: 1, kind: input, shape index: {}]
  %s2 = inlined_call_operand.vmem [shape: f32[1,128], index: 2, kind: input, shape index: {}]
  %s3 = inlined_call_operand.hbm [shape: f32[128,128], index: 3, kind: input, shape index: {}]
  %s4 = inlined_call_operand.vmem [shape: f32[1,128], index: 4, kind: input, shape index: {}]
  %s5 = inlined_call_operand.hbm [shape: f32[256,128], index: 5, kind: output, shape index: {}]
  %s6 = sld [smem:[#allocation0]]
  $region42: #{tpu_custom_call.1} parent=0
    _
  %s8 = ssub.s32 1, %s6
  %s9 = scalar_select 0, %s8, %s6
  $region1: #{tpu_custom_call.1} parent=0
    #allocation2 [shape = 'u8[131072]{0}', space=vmem, size = 0x20000, scoped, tag = 'input window, operand 0, single buffered']
    #allocation3 [shape = 's32[1]{0}', space=sflag, size = 0x4, scoped, tag = 'scoped memory for tpu_custom_call.1']
    #allocation4 [shape = 's32[1]{0}', space=sflag, size = 0x4, scoped, tag = 'scoped memory for tpu_custom_call.1']
    #allocation5 [shape = 'u8[65536]{0}', space=vmem, size = 0x10000, scoped, tag = 'input window, operand 1, single buffered']
    #allocation6 [shape = 's32[1]{0}', space=sflag, size = 0x4, scoped, tag = 'scoped memory for tpu_custom_call.1']
    #allocation7 [shape = 'u8[65536]{0}', space=vmem, size = 0x10000, scoped, tag = 'input window, operand 3, single buffered']
    #allocation8 [shape = 'u8[131072]{0}', space=vmem, size = 0x20000, scoped, tag = 'output window, operand 0, single buffered']
    %10 = vsyncpa [#allocation3], 0
    %11 = vsyncpa [#allocation6], 0
    %12 = vsyncpa [#allocation4], 0
    // Predicated region
    $region2: #{tpu_custom_call.1} parent=1 // pred_check
      _
    $region3: #{tpu_custom_call.1} parent=1 // pred_check_branch
      %14 = sbr.rel (0) target = $region5
    $region4: #{tpu_custom_call.1} parent=1 // pred_region
      %16 = vsyncadd [#allocation3], 0
      %s17 = sshll.u32 %s0, 4
      %s18 = int_to_ptr.hbm [resolvable:$true] %s17
      %s19 = sshll.u32 [#allocation2], 4
      %s20 = int_to_ptr.vmem [resolvable:$true] %s19
      %25 = dma.hbm_to_vmem [thread:$0]  %s18, 4096, %s20, [#allocation3], 128, 128, 8
    $region5: #{tpu_custom_call.1} parent=1 // pred_fallthru
      _
    // Predicated region
    $region6: #{tpu_custom_call.1} parent=1 // pred_check
      _
    $region7: #{tpu_custom_call.1} parent=1 // pred_check_branch
      %27 = sbr.rel (0) target = $region9
    $region8: #{tpu_custom_call.1} parent=1 // pred_region
      %29 = vsyncadd [#allocation6], 0
      %s30 = sshll.u32 %s1, 4
      %s31 = int_to_ptr.hbm [resolvable:$true] %s30
      %s32 = sshll.u32 [#allocation5], 4
      %s33 = int_to_ptr.vmem [resolvable:$true] %s32
      %38 = dma.hbm_to_vmem [thread:$0]  %s31, 2048, %s33, [#allocation6], 128, 128, 8
    $region9: #{tpu_custom_call.1} parent=1 // pred_fallthru
      _
    // Predicated region
    $region10: #{tpu_custom_call.1} parent=1 // pred_check
      _
    $region11: #{tpu_custom_call.1} parent=1 // pred_check_branch
      %40 = sbr.rel (0) target = $region13
    $region12: #{tpu_custom_call.1} parent=1 // pred_region
      _
    $region13: #{tpu_custom_call.1} parent=1 // pred_fallthru
      _
    // Predicated region
    $region14: #{tpu_custom_call.1} parent=1 // pred_check
      _
    $region15: #{tpu_custom_call.1} parent=1 // pred_check_branch
      %42 = sbr.rel (0) target = $region17
    $region16: #{tpu_custom_call.1} parent=1 // pred_region
      %44 = vsyncadd [#allocation6], 0
      %s45 = sshll.u32 %s3, 4
      %s46 = int_to_ptr.hbm [resolvable:$true] %s45
      %s47 = sshll.u32 [#allocation7], 4
      %s48 = int_to_ptr.vmem [resolvable:$true] %s47
      %53 = dma.hbm_to_vmem [thread:$0]  %s46, 2048, %s48, [#allocation6], 128, 128, 8
    $region17: #{tpu_custom_call.1} parent=1 // pred_fallthru
      _
    // Predicated region
    $region18: #{tpu_custom_call.1} parent=1 // pred_check
      _
    $region19: #{tpu_custom_call.1} parent=1 // pred_check_branch
      %55 = sbr.rel (0) target = $region21
    $region20: #{tpu_custom_call.1} parent=1 // pred_region
      _
    $region21: #{tpu_custom_call.1} parent=1 // pred_fallthru
      _
    // Predicated region
    $region22: #{tpu_custom_call.1} parent=1 // pred_check
      _
    $region23: #{tpu_custom_call.1} parent=1 // pred_check_branch
      %57 = sbr.rel (0) target = $region25
    $region24: #{tpu_custom_call.1} parent=1 // pred_region
      %59 = dma.done [#allocation3], 4096
    $region25: #{tpu_custom_call.1} parent=1 // pred_fallthru
      _
    // Predicated region
    $region26: #{tpu_custom_call.1} parent=1 // pred_check
      _
    $region27: #{tpu_custom_call.1} parent=1 // pred_check_branch
      %61 = sbr.rel (0) target = $region29
    $region28: #{tpu_custom_call.1} parent=1 // pred_region
      %63 = dma.done [#allocation6], 2048
    $region29: #{tpu_custom_call.1} parent=1 // pred_fallthru
      _
    // Predicated region
    $region30: #{tpu_custom_call.1} parent=1 // pred_check
      _
    $region31: #{tpu_custom_call.1} parent=1 // pred_check_branch
      %65 = sbr.rel (0) target = $region33
    $region32: #{tpu_custom_call.1} parent=1 // pred_region
      %67 = dma.done [#allocation6], 2048
    $region33: #{tpu_custom_call.1} parent=1 // pred_fallthru
      _
    %v68 = vld [vmem:[#allocation2] sm:$0xff]
    %v69 = vld [vmem:[#allocation2 + $0x8] sm:$0xff]
    %v70 = vld [vmem:[#allocation2 + $0x10] sm:$0xff]
    %v71 = vld [vmem:[#allocation2 + $0x18] sm:$0xff]
    %v72 = vld [vmem:[#allocation2 + $0x20] sm:$0xff]
    %v73 = vld [vmem:[#allocation2 + $0x28] sm:$0xff]
    %v74 = vld [vmem:[#allocation2 + $0x30] sm:$0xff]
    %v75 = vld [vmem:[#allocation2 + $0x38] sm:$0xff]
    %v76 = vld [vmem:[#allocation2 + $0x40] sm:$0xff]
    %v77 = vld [vmem:[#allocation2 + $0x48] sm:$0xff]
    %v78 = vld [vmem:[#allocation2 + $0x50] sm:$0xff]
    %v79 = vld [vmem:[#allocation2 + $0x58] sm:$0xff]
    %v80 = vld [vmem:[#allocation2 + $0x60] sm:$0xff]
    %v81 = vld [vmem:[#allocation2 + $0x68] sm:$0xff]
    %v82 = vld [vmem:[#allocation2 + $0x70] sm:$0xff]
    %v83 = vld [vmem:[#allocation2 + $0x78] sm:$0xff]
    %v84 = vld [vmem:[#allocation2 + $0x80] sm:$0xff]
    %v85 = vld [vmem:[#allocation2 + $0x88] sm:$0xff]
    %v86 = vld [vmem:[#allocation2 + $0x90] sm:$0xff]
    %v87 = vld [vmem:[#allocation2 + $0x98] sm:$0xff]
    %v88 = vld [vmem:[#allocation2 + $0xa0] sm:$0xff]
    %v89 = vld [vmem:[#allocation2 + $0xa8] sm:$0xff]
    %v90 = vld [vmem:[#allocation2 + $0xb0] sm:$0xff]
    %v91 = vld [vmem:[#allocation2 + $0xb8] sm:$0xff]
    %v92 = vld [vmem:[#allocation2 + $0xc0] sm:$0xff]
    %v93 = vld [vmem:[#allocation2 + $0xc8] sm:$0xff]
    %v94 = vld [vmem:[#allocation2 + $0xd0] sm:$0xff]
    %v95 = vld [vmem:[#allocation2 + $0xd8] sm:$0xff]
    %v96 = vld [vmem:[#allocation2 + $0xe0] sm:$0xff]
    %v97 = vld [vmem:[#allocation2 + $0xe8] sm:$0xff]
    %v98 = vld [vmem:[#allocation2 + $0xf0] sm:$0xff]
    %v99 = vld [vmem:[#allocation2 + $0xf8] sm:$0xff]
    %v100 = vld [vmem:[#allocation5] sm:$0xff]
    %v101 = vld [vmem:[#allocation5 + $0x8] sm:$0xff]
    %v102 = vld [vmem:[#allocation5 + $0x10] sm:$0xff]
    %v103 = vld [vmem:[#allocation5 + $0x18] sm:$0xff]
    %v104 = vld [vmem:[#allocation5 + $0x20] sm:$0xff]
    %v105 = vld [vmem:[#allocation5 + $0x28] sm:$0xff]
    %v106 = vld [vmem:[#allocation5 + $0x30] sm:$0xff]
    %v107 = vld [vmem:[#allocation5 + $0x38] sm:$0xff]
    %v108 = vld [vmem:[#allocation5 + $0x40] sm:$0xff]
    %v109 = vld [vmem:[#allocation5 + $0x48] sm:$0xff]
    %v110 = vld [vmem:[#allocation5 + $0x50] sm:$0xff]
    %v111 = vld [vmem:[#allocation5 + $0x58] sm:$0xff]
    %v112 = vld [vmem:[#allocation5 + $0x60] sm:$0xff]
    %v113 = vld [vmem:[#allocation5 + $0x68] sm:$0xff]
    %v114 = vld [vmem:[#allocation5 + $0x70] sm:$0xff]
    %v115 = vld [vmem:[#allocation5 + $0x78] sm:$0xff]
    %v116 = vld [vmem:[%s2] sm:$0x1]
    %v118 = vperm.slane %v116, 0
    %120 = vmatpush.msra.mxu0 %v115
    %121 = vmatpush.msra.mxu0 %v114
    %122 = vmatpush.msra.mxu0 %v113
    %123 = vmatpush.msra.mxu0 %v112
    %124 = vmatpush.msra.mxu0 %v111
    %125 = vmatpush.msra.mxu0 %v110
    %126 = vmatpush.msra.mxu0 %v109
    %127 = vmatpush.msra.mxu0 %v108
    %128 = vmatpush.msra.mxu0 %v107
    %129 = vmatpush.msra.mxu0 %v106
    %130 = vmatpush.msra.mxu0 %v105
    %131 = vmatpush.msra.mxu0 %v104
    %132 = vmatpush.msra.mxu0 %v103
    %133 = vmatpush.msra.mxu0 %v102
    %134 = vmatpush.msra.mxu0 %v101
    %135 = vmatpush.msra.mxu0 %v100
    %136 = vmatmul.f32.gmra.mxu0 %v68
    %v137 = vpop.f32.mrf.mxu0
    %v138 = vadd.f32 %v118, %v137
    %139 = vmatmul.f32.gmra.mxu0 %v69
    %v140 = vpop.f32.mrf.mxu0
    %v141 = vadd.f32 %v118, %v140
    %142 = vmatmul.f32.gmra.mxu0 %v70
    %v143 = vpop.f32.mrf.mxu0
    %v144 = vadd.f32 %v118, %v143
    %145 = vmatmul.f32.gmra.mxu0 %v71
    %v146 = vpop.f32.mrf.mxu0
    %v147 = vadd.f32 %v118, %v146
    %148 = vmatmul.f32.gmra.mxu0 %v72
    %v149 = vpop.f32.mrf.mxu0
    %v150 = vadd.f32 %v118, %v149
    %151 = vmatmul.f32.gmra.mxu0 %v73
    %v152 = vpop.f32.mrf.mxu0
    %v153 = vadd.f32 %v118, %v152
    %154 = vmatmul.f32.gmra.mxu0 %v74
    %v155 = vpop.f32.mrf.mxu0
    %v156 = vadd.f32 %v118, %v155
    %157 = vmatmul.f32.gmra.mxu0 %v75
    %v158 = vpop.f32.mrf.mxu0
    %v159 = vadd.f32 %v118, %v158
    %160 = vmatmul.f32.gmra.mxu0 %v76
    %v161 = vpop.f32.mrf.mxu0
    %v162 = vadd.f32 %v118, %v161
    %163 = vmatmul.f32.gmra.mxu0 %v77
    %v164 = vpop.f32.mrf.mxu0
    %v165 = vadd.f32 %v118, %v164
    %166 = vmatmul.f32.gmra.mxu0 %v78
    %v167 = vpop.f32.mrf.mxu0
    %v168 = vadd.f32 %v118, %v167
    %169 = vmatmul.f32.gmra.mxu0 %v79
    %v170 = vpop.f32.mrf.mxu0
    %v171 = vadd.f32 %v118, %v170
    %172 = vmatmul.f32.gmra.mxu0 %v80
    %v173 = vpop.f32.mrf.mxu0
    %v174 = vadd.f32 %v118, %v173
    %175 = vmatmul.f32.gmra.mxu0 %v81
    %v176 = vpop.f32.mrf.mxu0
    %v177 = vadd.f32 %v118, %v176
    %178 = vmatmul.f32.gmra.mxu0 %v82
    %v179 = vpop.f32.mrf.mxu0
    %v180 = vadd.f32 %v118, %v179
    %181 = vmatmul.f32.gmra.mxu0 %v83
    %v182 = vpop.f32.mrf.mxu0
    %v183 = vadd.f32 %v118, %v182
    %184 = vmatmul.f32.gmra.mxu0 %v84
    %v185 = vpop.f32.mrf.mxu0
    %v186 = vadd.f32 %v118, %v185
    %187 = vmatmul.f32.gmra.mxu0 %v85
    %v188 = vpop.f32.mrf.mxu0
    %v189 = vadd.f32 %v118, %v188
    %190 = vmatmul.f32.gmra.mxu0 %v86
    %v191 = vpop.f32.mrf.mxu0
    %v192 = vadd.f32 %v118, %v191
    %193 = vmatmul.f32.gmra.mxu0 %v87
    %v194 = vpop.f32.mrf.mxu0
    %v195 = vadd.f32 %v118, %v194
    %196 = vmatmul.f32.gmra.mxu0 %v88
    %v197 = vpop.f32.mrf.mxu0
    %v198 = vadd.f32 %v118, %v197
    %199 = vmatmul.f32.gmra.mxu0 %v89
    %v200 = vpop.f32.mrf.mxu0
    %v201 = vadd.f32 %v118, %v200
    %202 = vmatmul.f32.gmra.mxu0 %v90
    %v203 = vpop.f32.mrf.mxu0
    %v204 = vadd.f32 %v118, %v203
    %205 = vmatmul.f32.gmra.mxu0 %v91
    %v206 = vpop.f32.mrf.mxu0
    %v207 = vadd.f32 %v118, %v206
    %208 = vmatmul.f32.gmra.mxu0 %v92
    %v209 = vpop.f32.mrf.mxu0
    %v210 = vadd.f32 %v118, %v209
    %211 = vmatmul.f32.gmra.mxu0 %v93
    %v212 = vpop.f32.mrf.mxu0
    %v213 = vadd.f32 %v118, %v212
    %214 = vmatmul.f32.gmra.mxu0 %v94
    %v215 = vpop.f32.mrf.mxu0
    %v216 = vadd.f32 %v118, %v215
    %217 = vmatmul.f32.gmra.mxu0 %v95
    %v218 = vpop.f32.mrf.mxu0
    %v219 = vadd.f32 %v118, %v218
    %220 = vmatmul.f32.gmra.mxu0 %v96
    %v221 = vpop.f32.mrf.mxu0
    %v222 = vadd.f32 %v118, %v221
    %223 = vmatmul.f32.gmra.mxu0 %v97
    %v224 = vpop.f32.mrf.mxu0
    %v225 = vadd.f32 %v118, %v224
    %226 = vmatmul.f32.gmra.mxu0 %v98
    %v227 = vpop.f32.mrf.mxu0
    %v228 = vadd.f32 %v118, %v227
    %229 = vmatmul.f32.gmra.mxu0 %v99
    %v230 = vpop.f32.mrf.mxu0
    %v231 = vadd.f32 %v118, %v230
    %232 = vdwg.mxu0
    %v233 = vmax.f32 %v138, 0.0
    %v234 = vmax.f32 %v141, 0.0
    %v235 = vmax.f32 %v144, 0.0
    %v236 = vmax.f32 %v147, 0.0
    %v237 = vmax.f32 %v150, 0.0
    %v238 = vmax.f32 %v153, 0.0
    %v239 = vmax.f32 %v156, 0.0
    %v240 = vmax.f32 %v159, 0.0
    %v241 = vmax.f32 %v162, 0.0
    %v242 = vmax.f32 %v165, 0.0
    %v243 = vmax.f32 %v168, 0.0
    %v244 = vmax.f32 %v171, 0.0
    %v245 = vmax.f32 %v174, 0.0
    %v246 = vmax.f32 %v177, 0.0
    %v247 = vmax.f32 %v180, 0.0
    %v248 = vmax.f32 %v183, 0.0
    %v249 = vmax.f32 %v186, 0.0
    %v250 = vmax.f32 %v189, 0.0
    %v251 = vmax.f32 %v192, 0.0
    %v252 = vmax.f32 %v195, 0.0
    %v253 = vmax.f32 %v198, 0.0
    %v254 = vmax.f32 %v201, 0.0
    %v255 = vmax.f32 %v204, 0.0
    %v256 = vmax.f32 %v207, 0.0
    %v257 = vmax.f32 %v210, 0.0
    %v258 = vmax.f32 %v213, 0.0
    %v259 = vmax.f32 %v216, 0.0
    %v260 = vmax.f32 %v219, 0.0
    %v261 = vmax.f32 %v222, 0.0
    %v262 = vmax.f32 %v225, 0.0
    %v263 = vmax.f32 %v228, 0.0
    %v264 = vmax.f32 %v231, 0.0
    %v265 = vld [vmem:[#allocation7] sm:$0xff]
    %v266 = vld [vmem:[#allocation7 + $0x8] sm:$0xff]
    %v267 = vld [vmem:[#allocation7 + $0x10] sm:$0xff]
    %v268 = vld [vmem:[#allocation7 + $0x18] sm:$0xff]
    %v269 = vld [vmem:[#allocation7 + $0x20] sm:$0xff]
    %v270 = vld [vmem:[#allocation7 + $0x28] sm:$0xff]
    %v271 = vld [vmem:[#allocation7 + $0x30] sm:$0xff]
    %v272 = vld [vmem:[#allocation7 + $0x38] sm:$0xff]
    %v273 = vld [vmem:[#allocation7 + $0x40] sm:$0xff]
    %v274 = vld [vmem:[#allocation7 + $0x48] sm:$0xff]
    %v275 = vld [vmem:[#allocation7 + $0x50] sm:$0xff]
    %v276 = vld [vmem:[#allocation7 + $0x58] sm:$0xff]
    %v277 = vld [vmem:[#allocation7 + $0x60] sm:$0xff]
    %v278 = vld [vmem:[#allocation7 + $0x68] sm:$0xff]
    %v279 = vld [vmem:[#allocation7 + $0x70] sm:$0xff]
    %v280 = vld [vmem:[#allocation7 + $0x78] sm:$0xff]
    %v281 = vld [vmem:[%s4] sm:$0x1]
    %v283 = vperm.slane %v281, 0
    %285 = vmatpush.msra.mxu0 %v280
    %286 = vmatpush.msra.mxu0 %v279
    %287 = vmatpush.msra.mxu0 %v278
    %288 = vmatpush.msra.mxu0 %v277
    %289 = vmatpush.msra.mxu0 %v276
    %290 = vmatpush.msra.mxu0 %v275
    %291 = vmatpush.msra.mxu0 %v274
    %292 = vmatpush.msra.mxu0 %v273
    %293 = vmatpush.msra.mxu0 %v272
    %294 = vmatpush.msra.mxu0 %v271
    %295 = vmatpush.msra.mxu0 %v270
    %296 = vmatpush.msra.mxu0 %v269
    %297 = vmatpush.msra.mxu0 %v268
    %298 = vmatpush.msra.mxu0 %v267
    %299 = vmatpush.msra.mxu0 %v266
    %300 = vmatpush.msra.mxu0 %v265
    %301 = vmatmul.f32.gmra.mxu0 %v233
    %v302 = vpop.f32.mrf.mxu0
    %v303 = vadd.f32 %v283, %v302
    %304 = vmatmul.f32.gmra.mxu0 %v234
    %v305 = vpop.f32.mrf.mxu0
    %v306 = vadd.f32 %v283, %v305
    %307 = vmatmul.f32.gmra.mxu0 %v235
    %v308 = vpop.f32.mrf.mxu0
    %v309 = vadd.f32 %v283, %v308
    %310 = vmatmul.f32.gmra.mxu0 %v236
    %v311 = vpop.f32.mrf.mxu0
    %v312 = vadd.f32 %v283, %v311
    %313 = vmatmul.f32.gmra.mxu0 %v237
    %v314 = vpop.f32.mrf.mxu0
    %v315 = vadd.f32 %v283, %v314
    %316 = vmatmul.f32.gmra.mxu0 %v238
    %v317 = vpop.f32.mrf.mxu0
    %v318 = vadd.f32 %v283, %v317
    %319 = vmatmul.f32.gmra.mxu0 %v239
    %v320 = vpop.f32.mrf.mxu0
    %v321 = vadd.f32 %v283, %v320
    %322 = vmatmul.f32.gmra.mxu0 %v240
    %v323 = vpop.f32.mrf.mxu0
    %v324 = vadd.f32 %v283, %v323
    %325 = vmatmul.f32.gmra.mxu0 %v241
    %v326 = vpop.f32.mrf.mxu0
    %v327 = vadd.f32 %v283, %v326
    %328 = vmatmul.f32.gmra.mxu0 %v242
    %v329 = vpop.f32.mrf.mxu0
    %v330 = vadd.f32 %v283, %v329
    %331 = vmatmul.f32.gmra.mxu0 %v243
    %v332 = vpop.f32.mrf.mxu0
    %v333 = vadd.f32 %v283, %v332
    %334 = vmatmul.f32.gmra.mxu0 %v244
    %v335 = vpop.f32.mrf.mxu0
    %v336 = vadd.f32 %v283, %v335
    %337 = vmatmul.f32.gmra.mxu0 %v245
    %v338 = vpop.f32.mrf.mxu0
    %v339 = vadd.f32 %v283, %v338
    %340 = vmatmul.f32.gmra.mxu0 %v246
    %v341 = vpop.f32.mrf.mxu0
    %v342 = vadd.f32 %v283, %v341
    %343 = vmatmul.f32.gmra.mxu0 %v247
    %v344 = vpop.f32.mrf.mxu0
    %v345 = vadd.f32 %v283, %v344
    %346 = vmatmul.f32.gmra.mxu0 %v248
    %v347 = vpop.f32.mrf.mxu0
    %v348 = vadd.f32 %v283, %v347
    %349 = vmatmul.f32.gmra.mxu0 %v249
    %v350 = vpop.f32.mrf.mxu0
    %v351 = vadd.f32 %v283, %v350
    %352 = vmatmul.f32.gmra.mxu0 %v250
    %v353 = vpop.f32.mrf.mxu0
    %v354 = vadd.f32 %v283, %v353
    %355 = vmatmul.f32.gmra.mxu0 %v251
    %v356 = vpop.f32.mrf.mxu0
    %v357 = vadd.f32 %v283, %v356
    %358 = vmatmul.f32.gmra.mxu0 %v252
    %v359 = vpop.f32.mrf.mxu0
    %v360 = vadd.f32 %v283, %v359
    %361 = vmatmul.f32.gmra.mxu0 %v253
    %v362 = vpop.f32.mrf.mxu0
    %v363 = vadd.f32 %v283, %v362
    %364 = vmatmul.f32.gmra.mxu0 %v254
    %v365 = vpop.f32.mrf.mxu0
    %v366 = vadd.f32 %v283, %v365
    %367 = vmatmul.f32.gmra.mxu0 %v255
    %v368 = vpop.f32.mrf.mxu0
    %v369 = vadd.f32 %v283, %v368
    %370 = vmatmul.f32.gmra.mxu0 %v256
    %v371 = vpop.f32.mrf.mxu0
    %v372 = vadd.f32 %v283, %v371
    %373 = vmatmul.f32.gmra.mxu0 %v257
    %v374 = vpop.f32.mrf.mxu0
    %v375 = vadd.f32 %v283, %v374
    %376 = vmatmul.f32.gmra.mxu0 %v258
    %v377 = vpop.f32.mrf.mxu0
    %v378 = vadd.f32 %v283, %v377
    %379 = vmatmul.f32.gmra.mxu0 %v259
    %v380 = vpop.f32.mrf.mxu0
    %v381 = vadd.f32 %v283, %v380
    %382 = vmatmul.f32.gmra.mxu0 %v260
    %v383 = vpop.f32.mrf.mxu0
    %v384 = vadd.f32 %v283, %v383
    %385 = vmatmul.f32.gmra.mxu0 %v261
    %v386 = vpop.f32.mrf.mxu0
    %v387 = vadd.f32 %v283, %v386
    %388 = vmatmul.f32.gmra.mxu0 %v262
    %v389 = vpop.f32.mrf.mxu0
    %v390 = vadd.f32 %v283, %v389
    %391 = vmatmul.f32.gmra.mxu0 %v263
    %v392 = vpop.f32.mrf.mxu0
    %v393 = vadd.f32 %v283, %v392
    %394 = vmatmul.f32.gmra.mxu0 %v264
    %v395 = vpop.f32.mrf.mxu0
    %v396 = vadd.f32 %v283, %v395
    %397 = vdwg.mxu0
    %v398 = vxor.u32 %v303, 2147483648
    %v399 = vxor.u32 %v306, 2147483648
    %v400 = vxor.u32 %v309, 2147483648
    %v401 = vxor.u32 %v312, 2147483648
    %v402 = vxor.u32 %v315, 2147483648
    %v403 = vxor.u32 %v318, 2147483648
    %v404 = vxor.u32 %v321, 2147483648
    %v405 = vxor.u32 %v324, 2147483648
    %v406 = vxor.u32 %v327, 2147483648
    %v407 = vxor.u32 %v330, 2147483648
    %v408 = vxor.u32 %v333, 2147483648
    %v409 = vxor.u32 %v336, 2147483648
    %v410 = vxor.u32 %v339, 2147483648
    %v411 = vxor.u32 %v342, 2147483648
    %v412 = vxor.u32 %v345, 2147483648
    %v413 = vxor.u32 %v348, 2147483648
    %v414 = vxor.u32 %v351, 2147483648
    %v415 = vxor.u32 %v354, 2147483648
    %v416 = vxor.u32 %v357, 2147483648
    %v417 = vxor.u32 %v360, 2147483648
    %v418 = vxor.u32 %v363, 2147483648
    %v419 = vxor.u32 %v366, 2147483648
    %v420 = vxor.u32 %v369, 2147483648
    %v421 = vxor.u32 %v372, 2147483648
    %v422 = vxor.u32 %v375, 2147483648
    %v423 = vxor.u32 %v378, 2147483648
    %v424 = vxor.u32 %v381, 2147483648
    %v425 = vxor.u32 %v384, 2147483648
    %v426 = vxor.u32 %v387, 2147483648
    %v427 = vxor.u32 %v390, 2147483648
    %v428 = vxor.u32 %v393, 2147483648
    %v429 = vxor.u32 %v396, 2147483648
    %v430 = vmul.f32 %v398, 1.442695
    %v431 = vpow.pop %v430
    %v432 = vmul.f32 %v399, 1.442695
    %v433 = vpow.pop %v432
    %v434 = vmul.f32 %v400, 1.442695
    %v435 = vpow.pop %v434
    %v436 = vmul.f32 %v401, 1.442695
    %v437 = vpow.pop %v436
    %v438 = vmul.f32 %v402, 1.442695
    %v439 = vpow.pop %v438
    %v440 = vmul.f32 %v403, 1.442695
    %v441 = vpow.pop %v440
    %v442 = vmul.f32 %v404, 1.442695
    %v443 = vpow.pop %v442
    %v444 = vmul.f32 %v405, 1.442695
    %v445 = vpow.pop %v444
    %v446 = vmul.f32 %v406, 1.442695
    %v447 = vpow.pop %v446
    %v448 = vmul.f32 %v407, 1.442695
    %v449 = vpow.pop %v448
    %v450 = vmul.f32 %v408, 1.442695
    %v451 = vpow.pop %v450
    %v452 = vmul.f32 %v409, 1.442695
    %v453 = vpow.pop %v452
    %v454 = vmul.f32 %v410, 1.442695
    %v455 = vpow.pop %v454
    %v456 = vmul.f32 %v411, 1.442695
    %v457 = vpow.pop %v456
    %v458 = vmul.f32 %v412, 1.442695
    %v459 = vpow.pop %v458
    %v460 = vmul.f32 %v413, 1.442695
    %v461 = vpow.pop %v460
    %v462 = vmul.f32 %v414, 1.442695
    %v463 = vpow.pop %v462
    %v464 = vmul.f32 %v415, 1.442695
    %v465 = vpow.pop %v464
    %v466 = vmul.f32 %v416, 1.442695
    %v467 = vpow.pop %v466
    %v468 = vmul.f32 %v417, 1.442695
    %v469 = vpow.pop %v468
    %v470 = vmul.f32 %v418, 1.442695
    %v471 = vpow.pop %v470
    %v472 = vmul.f32 %v419, 1.442695
    %v473 = vpow.pop %v472
    %v474 = vmul.f32 %v420, 1.442695
    %v475 = vpow.pop %v474
    %v476 = vmul.f32 %v421, 1.442695
    %v477 = vpow.pop %v476
    %v478 = vmul.f32 %v422, 1.442695
    %v479 = vpow.pop %v478
    %v480 = vmul.f32 %v423, 1.442695
    %v481 = vpow.pop %v480
    %v482 = vmul.f32 %v424, 1.442695
    %v483 = vpow.pop %v482
    %v484 = vmul.f32 %v425, 1.442695
    %v485 = vpow.pop %v484
    %v486 = vmul.f32 %v426, 1.442695
    %v487 = vpow.pop %v486
    %v488 = vmul.f32 %v427, 1.442695
    %v489 = vpow.pop %v488
    %v490 = vmul.f32 %v428, 1.442695
    %v491 = vpow.pop %v490
    %v492 = vmul.f32 %v429, 1.442695
    %v493 = vpow.pop %v492
    %v494 = vadd.f32 %v431, 1.0
    %v495 = vadd.f32 %v433, 1.0
    %v496 = vadd.f32 %v435, 1.0
    %v497 = vadd.f32 %v437, 1.0
    %v498 = vadd.f32 %v439, 1.0
    %v499 = vadd.f32 %v441, 1.0
    %v500 = vadd.f32 %v443, 1.0
    %v501 = vadd.f32 %v445, 1.0
    %v502 = vadd.f32 %v447, 1.0
    %v503 = vadd.f32 %v449, 1.0
    %v504 = vadd.f32 %v451, 1.0
    %v505 = vadd.f32 %v453, 1.0
    %v506 = vadd.f32 %v455, 1.0
    %v507 = vadd.f32 %v457, 1.0
    %v508 = vadd.f32 %v459, 1.0
    %v509 = vadd.f32 %v461, 1.0
    %v510 = vadd.f32 %v463, 1.0
    %v511 = vadd.f32 %v465, 1.0
    %v512 = vadd.f32 %v467, 1.0
    %v513 = vadd.f32 %v469, 1.0
    %v514 = vadd.f32 %v471, 1.0
    %v515 = vadd.f32 %v473, 1.0
    %v516 = vadd.f32 %v475, 1.0
    %v517 = vadd.f32 %v477, 1.0
    %v518 = vadd.f32 %v479, 1.0
    %v519 = vadd.f32 %v481, 1.0
    %v520 = vadd.f32 %v483, 1.0
    %v521 = vadd.f32 %v485, 1.0
    %v522 = vadd.f32 %v487, 1.0
    %v523 = vadd.f32 %v489, 1.0
    %v524 = vadd.f32 %v491, 1.0
    %v525 = vadd.f32 %v493, 1.0
    %v526 = vrcp.pop %v494
    %v527 = vmul.f32 %v494, %v526
    %v528 = vsub.f32 1.0, %v527
    %v529 = vmul.f32 %v526, %v528
    %v530 = vadd.f32 %v526, %v529
    %vm531 = vweird.f32 %v494
    %vm532 = vweird.f32 %v526
    %vm533 = vmor %vm531, %vm532
    %v534 = vsel %vm533, %v526, %v530
    %v535 = vand.u32 2147483647, %v494
    %vm536 = vcmp.eq.f32.partialorder %v535, 8.507059e+37
    %v537 = vand.u32 %v494, 2147483648
    %v538 = vor.u32 1.1754944e-38, %v537
    %v539 = vsel %vm536, %v538, %v534
    %v540 = vmul.f32 1.0, %v539
    %v541 = vrcp.pop %v495
    %v542 = vmul.f32 %v495, %v541
    %v543 = vsub.f32 1.0, %v542
    %v544 = vmul.f32 %v541, %v543
    %v545 = vadd.f32 %v541, %v544
    %vm546 = vweird.f32 %v495
    %vm547 = vweird.f32 %v541
    %vm548 = vmor %vm546, %vm547
    %v549 = vsel %vm548, %v541, %v545
    %v550 = vand.u32 2147483647, %v495
    %vm551 = vcmp.eq.f32.partialorder %v550, 8.507059e+37
    %v552 = vand.u32 %v495, 2147483648
    %v553 = vor.u32 1.1754944e-38, %v552
    %v554 = vsel %vm551, %v553, %v549
    %v555 = vmul.f32 1.0, %v554
    %v556 = vrcp.pop %v496
    %v557 = vmul.f32 %v496, %v556
    %v558 = vsub.f32 1.0, %v557
    %v559 = vmul.f32 %v556, %v558
    %v560 = vadd.f32 %v556, %v559
    %vm561 = vweird.f32 %v496
    %vm562 = vweird.f32 %v556
    %vm563 = vmor %vm561, %vm562
    %v564 = vsel %vm563, %v556, %v560
    %v565 = vand.u32 2147483647, %v496
    %vm566 = vcmp.eq.f32.partialorder %v565, 8.507059e+37
    %v567 = vand.u32 %v496, 2147483648
    %v568 = vor.u32 1.1754944e-38, %v567
    %v569 = vsel %vm566, %v568, %v564
    %v570 = vmul.f32 1.0, %v569
    %v571 = vrcp.pop %v497
    %v572 = vmul.f32 %v497, %v571
    %v573 = vsub.f32 1.0, %v572
    %v574 = vmul.f32 %v571, %v573
    %v575 = vadd.f32 %v571, %v574
    %vm576 = vweird.f32 %v497
    %vm577 = vweird.f32 %v571
    %vm578 = vmor %vm576, %vm577
    %v579 = vsel %vm578, %v571, %v575
    %v580 = vand.u32 2147483647, %v497
    %vm581 = vcmp.eq.f32.partialorder %v580, 8.507059e+37
    %v582 = vand.u32 %v497, 2147483648
    %v583 = vor.u32 1.1754944e-38, %v582
    %v584 = vsel %vm581, %v583, %v579
    %v585 = vmul.f32 1.0, %v584
    %v586 = vrcp.pop %v498
    %v587 = vmul.f32 %v498, %v586
    %v588 = vsub.f32 1.0, %v587
    %v589 = vmul.f32 %v586, %v588
    %v590 = vadd.f32 %v586, %v589
    %vm591 = vweird.f32 %v498
    %vm592 = vweird.f32 %v586
    %vm593 = vmor %vm591, %vm592
    %v594 = vsel %vm593, %v586, %v590
    %v595 = vand.u32 2147483647, %v498
    %vm596 = vcmp.eq.f32.partialorder %v595, 8.507059e+37
    %v597 = vand.u32 %v498, 2147483648
    %v598 = vor.u32 1.1754944e-38, %v597
    %v599 = vsel %vm596, %v598, %v594
    %v600 = vmul.f32 1.0, %v599
    %v601 = vrcp.pop %v499
    %v602 = vmul.f32 %v499, %v601
    %v603 = vsub.f32 1.0, %v602
    %v604 = vmul.f32 %v601, %v603
    %v605 = vadd.f32 %v601, %v604
    %vm606 = vweird.f32 %v499
    %vm607 = vweird.f32 %v601
    %vm608 = vmor %vm606, %vm607
    %v609 = vsel %vm608, %v601, %v605
    %v610 = vand.u32 2147483647, %v499
    %vm611 = vcmp.eq.f32.partialorder %v610, 8.507059e+37
    %v612 = vand.u32 %v499, 2147483648
    %v613 = vor.u32 1.1754944e-38, %v612
    %v614 = vsel %vm611, %v613, %v609
    %v615 = vmul.f32 1.0, %v614
    %v616 = vrcp.pop %v500
    %v617 = vmul.f32 %v500, %v616
    %v618 = vsub.f32 1.0, %v617
    %v619 = vmul.f32 %v616, %v618
    %v620 = vadd.f32 %v616, %v619
    %vm621 = vweird.f32 %v500
    %vm622 = vweird.f32 %v616
    %vm623 = vmor %vm621, %vm622
    %v624 = vsel %vm623, %v616, %v620
    %v625 = vand.u32 2147483647, %v500
    %vm626 = vcmp.eq.f32.partialorder %v625, 8.507059e+37
    %v627 = vand.u32 %v500, 2147483648
    %v628 = vor.u32 1.1754944e-38, %v627
    %v629 = vsel %vm626, %v628, %v624
    %v630 = vmul.f32 1.0, %v629
    %v631 = vrcp.pop %v501
    %v632 = vmul.f32 %v501, %v631
    %v633 = vsub.f32 1.0, %v632
    %v634 = vmul.f32 %v631, %v633
    %v635 = vadd.f32 %v631, %v634
    %vm636 = vweird.f32 %v501
    %vm637 = vweird.f32 %v631
    %vm638 = vmor %vm636, %vm637
    %v639 = vsel %vm638, %v631, %v635
    %v640 = vand.u32 2147483647, %v501
    %vm641 = vcmp.eq.f32.partialorder %v640, 8.507059e+37
    %v642 = vand.u32 %v501, 2147483648
    %v643 = vor.u32 1.1754944e-38, %v642
    %v644 = vsel %vm641, %v643, %v639
    %v645 = vmul.f32 1.0, %v644
    %v646 = vrcp.pop %v502
    %v647 = vmul.f32 %v502, %v646
    %v648 = vsub.f32 1.0, %v647
    %v649 = vmul.f32 %v646, %v648
    %v650 = vadd.f32 %v646, %v649
    %vm651 = vweird.f32 %v502
    %vm652 = vweird.f32 %v646
    %vm653 = vmor %vm651, %vm652
    %v654 = vsel %vm653, %v646, %v650
    %v655 = vand.u32 2147483647, %v502
    %vm656 = vcmp.eq.f32.partialorder %v655, 8.507059e+37
    %v657 = vand.u32 %v502, 2147483648
    %v658 = vor.u32 1.1754944e-38, %v657
    %v659 = vsel %vm656, %v658, %v654
    %v660 = vmul.f32 1.0, %v659
    %v661 = vrcp.pop %v503
    %v662 = vmul.f32 %v503, %v661
    %v663 = vsub.f32 1.0, %v662
    %v664 = vmul.f32 %v661, %v663
    %v665 = vadd.f32 %v661, %v664
    %vm666 = vweird.f32 %v503
    %vm667 = vweird.f32 %v661
    %vm668 = vmor %vm666, %vm667
    %v669 = vsel %vm668, %v661, %v665
    %v670 = vand.u32 2147483647, %v503
    %vm671 = vcmp.eq.f32.partialorder %v670, 8.507059e+37
    %v672 = vand.u32 %v503, 2147483648
    %v673 = vor.u32 1.1754944e-38, %v672
    %v674 = vsel %vm671, %v673, %v669
    %v675 = vmul.f32 1.0, %v674
    %v676 = vrcp.pop %v504
    %v677 = vmul.f32 %v504, %v676
    %v678 = vsub.f32 1.0, %v677
    %v679 = vmul.f32 %v676, %v678
    %v680 = vadd.f32 %v676, %v679
    %vm681 = vweird.f32 %v504
    %vm682 = vweird.f32 %v676
    %vm683 = vmor %vm681, %vm682
    %v684 = vsel %vm683, %v676, %v680
    %v685 = vand.u32 2147483647, %v504
    %vm686 = vcmp.eq.f32.partialorder %v685, 8.507059e+37
    %v687 = vand.u32 %v504, 2147483648
    %v688 = vor.u32 1.1754944e-38, %v687
    %v689 = vsel %vm686, %v688, %v684
    %v690 = vmul.f32 1.0, %v689
    %v691 = vrcp.pop %v505
    %v692 = vmul.f32 %v505, %v691
    %v693 = vsub.f32 1.0, %v692
    %v694 = vmul.f32 %v691, %v693
    %v695 = vadd.f32 %v691, %v694
    %vm696 = vweird.f32 %v505
    %vm697 = vweird.f32 %v691
    %vm698 = vmor %vm696, %vm697
    %v699 = vsel %vm698, %v691, %v695
    %v700 = vand.u32 2147483647, %v505
    %vm701 = vcmp.eq.f32.partialorder %v700, 8.507059e+37
    %v702 = vand.u32 %v505, 2147483648
    %v703 = vor.u32 1.1754944e-38, %v702
    %v704 = vsel %vm701, %v703, %v699
    %v705 = vmul.f32 1.0, %v704
    %v706 = vrcp.pop %v506
    %v707 = vmul.f32 %v506, %v706
    %v708 = vsub.f32 1.0, %v707
    %v709 = vmul.f32 %v706, %v708
    %v710 = vadd.f32 %v706, %v709
    %vm711 = vweird.f32 %v506
    %vm712 = vweird.f32 %v706
    %vm713 = vmor %vm711, %vm712
    %v714 = vsel %vm713, %v706, %v710
    %v715 = vand.u32 2147483647, %v506
    %vm716 = vcmp.eq.f32.partialorder %v715, 8.507059e+37
    %v717 = vand.u32 %v506, 2147483648
    %v718 = vor.u32 1.1754944e-38, %v717
    %v719 = vsel %vm716, %v718, %v714
    %v720 = vmul.f32 1.0, %v719
    %v721 = vrcp.pop %v507
    %v722 = vmul.f32 %v507, %v721
    %v723 = vsub.f32 1.0, %v722
    %v724 = vmul.f32 %v721, %v723
    %v725 = vadd.f32 %v721, %v724
    %vm726 = vweird.f32 %v507
    %vm727 = vweird.f32 %v721
    %vm728 = vmor %vm726, %vm727
    %v729 = vsel %vm728, %v721, %v725
    %v730 = vand.u32 2147483647, %v507
    %vm731 = vcmp.eq.f32.partialorder %v730, 8.507059e+37
    %v732 = vand.u32 %v507, 2147483648
    %v733 = vor.u32 1.1754944e-38, %v732
    %v734 = vsel %vm731, %v733, %v729
    %v735 = vmul.f32 1.0, %v734
    %v736 = vrcp.pop %v508
    %v737 = vmul.f32 %v508, %v736
    %v738 = vsub.f32 1.0, %v737
    %v739 = vmul.f32 %v736, %v738
    %v740 = vadd.f32 %v736, %v739
    %vm741 = vweird.f32 %v508
    %vm742 = vweird.f32 %v736
    %vm743 = vmor %vm741, %vm742
    %v744 = vsel %vm743, %v736, %v740
    %v745 = vand.u32 2147483647, %v508
    %vm746 = vcmp.eq.f32.partialorder %v745, 8.507059e+37
    %v747 = vand.u32 %v508, 2147483648
    %v748 = vor.u32 1.1754944e-38, %v747
    %v749 = vsel %vm746, %v748, %v744
    %v750 = vmul.f32 1.0, %v749
    %v751 = vrcp.pop %v509
    %v752 = vmul.f32 %v509, %v751
    %v753 = vsub.f32 1.0, %v752
    %v754 = vmul.f32 %v751, %v753
    %v755 = vadd.f32 %v751, %v754
    %vm756 = vweird.f32 %v509
    %vm757 = vweird.f32 %v751
    %vm758 = vmor %vm756, %vm757
    %v759 = vsel %vm758, %v751, %v755
    %v760 = vand.u32 2147483647, %v509
    %vm761 = vcmp.eq.f32.partialorder %v760, 8.507059e+37
    %v762 = vand.u32 %v509, 2147483648
    %v763 = vor.u32 1.1754944e-38, %v762
    %v764 = vsel %vm761, %v763, %v759
    %v765 = vmul.f32 1.0, %v764
    %v766 = vrcp.pop %v510
    %v767 = vmul.f32 %v510, %v766
    %v768 = vsub.f32 1.0, %v767
    %v769 = vmul.f32 %v766, %v768
    %v770 = vadd.f32 %v766, %v769
    %vm771 = vweird.f32 %v510
    %vm772 = vweird.f32 %v766
    %vm773 = vmor %vm771, %vm772
    %v774 = vsel %vm773, %v766, %v770
    %v775 = vand.u32 2147483647, %v510
    %vm776 = vcmp.eq.f32.partialorder %v775, 8.507059e+37
    %v777 = vand.u32 %v510, 2147483648
    %v778 = vor.u32 1.1754944e-38, %v777
    %v779 = vsel %vm776, %v778, %v774
    %v780 = vmul.f32 1.0, %v779
    %v781 = vrcp.pop %v511
    %v782 = vmul.f32 %v511, %v781
    %v783 = vsub.f32 1.0, %v782
    %v784 = vmul.f32 %v781, %v783
    %v785 = vadd.f32 %v781, %v784
    %vm786 = vweird.f32 %v511
    %vm787 = vweird.f32 %v781
    %vm788 = vmor %vm786, %vm787
    %v789 = vsel %vm788, %v781, %v785
    %v790 = vand.u32 2147483647, %v511
    %vm791 = vcmp.eq.f32.partialorder %v790, 8.507059e+37
    %v792 = vand.u32 %v511, 2147483648
    %v793 = vor.u32 1.1754944e-38, %v792
    %v794 = vsel %vm791, %v793, %v789
    %v795 = vmul.f32 1.0, %v794
    %v796 = vrcp.pop %v512
    %v797 = vmul.f32 %v512, %v796
    %v798 = vsub.f32 1.0, %v797
    %v799 = vmul.f32 %v796, %v798
    %v800 = vadd.f32 %v796, %v799
    %vm801 = vweird.f32 %v512
    %vm802 = vweird.f32 %v796
    %vm803 = vmor %vm801, %vm802
    %v804 = vsel %vm803, %v796, %v800
    %v805 = vand.u32 2147483647, %v512
    %vm806 = vcmp.eq.f32.partialorder %v805, 8.507059e+37
    %v807 = vand.u32 %v512, 2147483648
    %v808 = vor.u32 1.1754944e-38, %v807
    %v809 = vsel %vm806, %v808, %v804
    %v810 = vmul.f32 1.0, %v809
    %v811 = vrcp.pop %v513
    %v812 = vmul.f32 %v513, %v811
    %v813 = vsub.f32 1.0, %v812
    %v814 = vmul.f32 %v811, %v813
    %v815 = vadd.f32 %v811, %v814
    %vm816 = vweird.f32 %v513
    %vm817 = vweird.f32 %v811
    %vm818 = vmor %vm816, %vm817
    %v819 = vsel %vm818, %v811, %v815
    %v820 = vand.u32 2147483647, %v513
    %vm821 = vcmp.eq.f32.partialorder %v820, 8.507059e+37
    %v822 = vand.u32 %v513, 2147483648
    %v823 = vor.u32 1.1754944e-38, %v822
    %v824 = vsel %vm821, %v823, %v819
    %v825 = vmul.f32 1.0, %v824
    %v826 = vrcp.pop %v514
    %v827 = vmul.f32 %v514, %v826
    %v828 = vsub.f32 1.0, %v827
    %v829 = vmul.f32 %v826, %v828
    %v830 = vadd.f32 %v826, %v829
    %vm831 = vweird.f32 %v514
    %vm832 = vweird.f32 %v826
    %vm833 = vmor %vm831, %vm832
    %v834 = vsel %vm833, %v826, %v830
    %v835 = vand.u32 2147483647, %v514
    %vm836 = vcmp.eq.f32.partialorder %v835, 8.507059e+37
    %v837 = vand.u32 %v514, 2147483648
    %v838 = vor.u32 1.1754944e-38, %v837
    %v839 = vsel %vm836, %v838, %v834
    %v840 = vmul.f32 1.0, %v839
    %v841 = vrcp.pop %v515
    %v842 = vmul.f32 %v515, %v841
    %v843 = vsub.f32 1.0, %v842
    %v844 = vmul.f32 %v841, %v843
    %v845 = vadd.f32 %v841, %v844
    %vm846 = vweird.f32 %v515
    %vm847 = vweird.f32 %v841
    %vm848 = vmor %vm846, %vm847
    %v849 = vsel %vm848, %v841, %v845
    %v850 = vand.u32 2147483647, %v515
    %vm851 = vcmp.eq.f32.partialorder %v850, 8.507059e+37
    %v852 = vand.u32 %v515, 2147483648
    %v853 = vor.u32 1.1754944e-38, %v852
    %v854 = vsel %vm851, %v853, %v849
    %v855 = vmul.f32 1.0, %v854
    %v856 = vrcp.pop %v516
    %v857 = vmul.f32 %v516, %v856
    %v858 = vsub.f32 1.0, %v857
    %v859 = vmul.f32 %v856, %v858
    %v860 = vadd.f32 %v856, %v859
    %vm861 = vweird.f32 %v516
    %vm862 = vweird.f32 %v856
    %vm863 = vmor %vm861, %vm862
    %v864 = vsel %vm863, %v856, %v860
    %v865 = vand.u32 2147483647, %v516
    %vm866 = vcmp.eq.f32.partialorder %v865, 8.507059e+37
    %v867 = vand.u32 %v516, 2147483648
    %v868 = vor.u32 1.1754944e-38, %v867
    %v869 = vsel %vm866, %v868, %v864
    %v870 = vmul.f32 1.0, %v869
    %v871 = vrcp.pop %v517
    %v872 = vmul.f32 %v517, %v871
    %v873 = vsub.f32 1.0, %v872
    %v874 = vmul.f32 %v871, %v873
    %v875 = vadd.f32 %v871, %v874
    %vm876 = vweird.f32 %v517
    %vm877 = vweird.f32 %v871
    %vm878 = vmor %vm876, %vm877
    %v879 = vsel %vm878, %v871, %v875
    %v880 = vand.u32 2147483647, %v517
    %vm881 = vcmp.eq.f32.partialorder %v880, 8.507059e+37
    %v882 = vand.u32 %v517, 2147483648
    %v883 = vor.u32 1.1754944e-38, %v882
    %v884 = vsel %vm881, %v883, %v879
    %v885 = vmul.f32 1.0, %v884
    %v886 = vrcp.pop %v518
    %v887 = vmul.f32 %v518, %v886
    %v888 = vsub.f32 1.0, %v887
    %v889 = vmul.f32 %v886, %v888
    %v890 = vadd.f32 %v886, %v889
    %vm891 = vweird.f32 %v518
    %vm892 = vweird.f32 %v886
    %vm893 = vmor %vm891, %vm892
    %v894 = vsel %vm893, %v886, %v890
    %v895 = vand.u32 2147483647, %v518
    %vm896 = vcmp.eq.f32.partialorder %v895, 8.507059e+37
    %v897 = vand.u32 %v518, 2147483648
    %v898 = vor.u32 1.1754944e-38, %v897
    %v899 = vsel %vm896, %v898, %v894
    %v900 = vmul.f32 1.0, %v899
    %v901 = vrcp.pop %v519
    %v902 = vmul.f32 %v519, %v901
    %v903 = vsub.f32 1.0, %v902
    %v904 = vmul.f32 %v901, %v903
    %v905 = vadd.f32 %v901, %v904
    %vm906 = vweird.f32 %v519
    %vm907 = vweird.f32 %v901
    %vm908 = vmor %vm906, %vm907
    %v909 = vsel %vm908, %v901, %v905
    %v910 = vand.u32 2147483647, %v519
    %vm911 = vcmp.eq.f32.partialorder %v910, 8.507059e+37
    %v912 = vand.u32 %v519, 2147483648
    %v913 = vor.u32 1.1754944e-38, %v912
    %v914 = vsel %vm911, %v913, %v909
    %v915 = vmul.f32 1.0, %v914
    %v916 = vrcp.pop %v520
    %v917 = vmul.f32 %v520, %v916
    %v918 = vsub.f32 1.0, %v917
    %v919 = vmul.f32 %v916, %v918
    %v920 = vadd.f32 %v916, %v919
    %vm921 = vweird.f32 %v520
    %vm922 = vweird.f32 %v916
    %vm923 = vmor %vm921, %vm922
    %v924 = vsel %vm923, %v916, %v920
    %v925 = vand.u32 2147483647, %v520
    %vm926 = vcmp.eq.f32.partialorder %v925, 8.507059e+37
    %v927 = vand.u32 %v520, 2147483648
    %v928 = vor.u32 1.1754944e-38, %v927
    %v929 = vsel %vm926, %v928, %v924
    %v930 = vmul.f32 1.0, %v929
    %v931 = vrcp.pop %v521
    %v932 = vmul.f32 %v521, %v931
    %v933 = vsub.f32 1.0, %v932
    %v934 = vmul.f32 %v931, %v933
    %v935 = vadd.f32 %v931, %v934
    %vm936 = vweird.f32 %v521
    %vm937 = vweird.f32 %v931
    %vm938 = vmor %vm936, %vm937
    %v939 = vsel %vm938, %v931, %v935
    %v940 = vand.u32 2147483647, %v521
    %vm941 = vcmp.eq.f32.partialorder %v940, 8.507059e+37
    %v942 = vand.u32 %v521, 2147483648
    %v943 = vor.u32 1.1754944e-38, %v942
    %v944 = vsel %vm941, %v943, %v939
    %v945 = vmul.f32 1.0, %v944
    %v946 = vrcp.pop %v522
    %v947 = vmul.f32 %v522, %v946
    %v948 = vsub.f32 1.0, %v947
    %v949 = vmul.f32 %v946, %v948
    %v950 = vadd.f32 %v946, %v949
    %vm951 = vweird.f32 %v522
    %vm952 = vweird.f32 %v946
    %vm953 = vmor %vm951, %vm952
    %v954 = vsel %vm953, %v946, %v950
    %v955 = vand.u32 2147483647, %v522
    %vm956 = vcmp.eq.f32.partialorder %v955, 8.507059e+37
    %v957 = vand.u32 %v522, 2147483648
    %v958 = vor.u32 1.1754944e-38, %v957
    %v959 = vsel %vm956, %v958, %v954
    %v960 = vmul.f32 1.0, %v959
    %v961 = vrcp.pop %v523
    %v962 = vmul.f32 %v523, %v961
    %v963 = vsub.f32 1.0, %v962
    %v964 = vmul.f32 %v961, %v963
    %v965 = vadd.f32 %v961, %v964
    %vm966 = vweird.f32 %v523
    %vm967 = vweird.f32 %v961
    %vm968 = vmor %vm966, %vm967
    %v969 = vsel %vm968, %v961, %v965
    %v970 = vand.u32 2147483647, %v523
    %vm971 = vcmp.eq.f32.partialorder %v970, 8.507059e+37
    %v972 = vand.u32 %v523, 2147483648
    %v973 = vor.u32 1.1754944e-38, %v972
    %v974 = vsel %vm971, %v973, %v969
    %v975 = vmul.f32 1.0, %v974
    %v976 = vrcp.pop %v524
    %v977 = vmul.f32 %v524, %v976
    %v978 = vsub.f32 1.0, %v977
    %v979 = vmul.f32 %v976, %v978
    %v980 = vadd.f32 %v976, %v979
    %vm981 = vweird.f32 %v524
    %vm982 = vweird.f32 %v976
    %vm983 = vmor %vm981, %vm982
    %v984 = vsel %vm983, %v976, %v980
    %v985 = vand.u32 2147483647, %v524
    %vm986 = vcmp.eq.f32.partialorder %v985, 8.507059e+37
    %v987 = vand.u32 %v524, 2147483648
    %v988 = vor.u32 1.1754944e-38, %v987
    %v989 = vsel %vm986, %v988, %v984
    %v990 = vmul.f32 1.0, %v989
    %v991 = vrcp.pop %v525
    %v992 = vmul.f32 %v525, %v991
    %v993 = vsub.f32 1.0, %v992
    %v994 = vmul.f32 %v991, %v993
    %v995 = vadd.f32 %v991, %v994
    %vm996 = vweird.f32 %v525
    %vm997 = vweird.f32 %v991
    %vm998 = vmor %vm996, %vm997
    %v999 = vsel %vm998, %v991, %v995
    %v1000 = vand.u32 2147483647, %v525
    %vm1001 = vcmp.eq.f32.partialorder %v1000, 8.507059e+37
    %v1002 = vand.u32 %v525, 2147483648
    %v1003 = vor.u32 1.1754944e-38, %v1002
    %v1004 = vsel %vm1001, %v1003, %v999
    %v1005 = vmul.f32 1.0, %v1004
    %1006 = vst [vmem:[#allocation8] sm:$0xff] %v540
    %1007 = vst [vmem:[#allocation8 + $0x8] sm:$0xff] %v555
    %1008 = vst [vmem:[#allocation8 + $0x10] sm:$0xff] %v570
    %1009 = vst [vmem:[#allocation8 + $0x18] sm:$0xff] %v585
    %1010 = vst [vmem:[#allocation8 + $0x20] sm:$0xff] %v600
    %1011 = vst [vmem:[#allocation8 + $0x28] sm:$0xff] %v615
    %1012 = vst [vmem:[#allocation8 + $0x30] sm:$0xff] %v630
    %1013 = vst [vmem:[#allocation8 + $0x38] sm:$0xff] %v645
    %1014 = vst [vmem:[#allocation8 + $0x40] sm:$0xff] %v660
    %1015 = vst [vmem:[#allocation8 + $0x48] sm:$0xff] %v675
    %1016 = vst [vmem:[#allocation8 + $0x50] sm:$0xff] %v690
    %1017 = vst [vmem:[#allocation8 + $0x58] sm:$0xff] %v705
    %1018 = vst [vmem:[#allocation8 + $0x60] sm:$0xff] %v720
    %1019 = vst [vmem:[#allocation8 + $0x68] sm:$0xff] %v735
    %1020 = vst [vmem:[#allocation8 + $0x70] sm:$0xff] %v750
    %1021 = vst [vmem:[#allocation8 + $0x78] sm:$0xff] %v765
    %1022 = vst [vmem:[#allocation8 + $0x80] sm:$0xff] %v780
    %1023 = vst [vmem:[#allocation8 + $0x88] sm:$0xff] %v795
    %1024 = vst [vmem:[#allocation8 + $0x90] sm:$0xff] %v810
    %1025 = vst [vmem:[#allocation8 + $0x98] sm:$0xff] %v825
    %1026 = vst [vmem:[#allocation8 + $0xa0] sm:$0xff] %v840
    %1027 = vst [vmem:[#allocation8 + $0xa8] sm:$0xff] %v855
    %1028 = vst [vmem:[#allocation8 + $0xb0] sm:$0xff] %v870
    %1029 = vst [vmem:[#allocation8 + $0xb8] sm:$0xff] %v885
    %1030 = vst [vmem:[#allocation8 + $0xc0] sm:$0xff] %v900
    %1031 = vst [vmem:[#allocation8 + $0xc8] sm:$0xff] %v915
    %1032 = vst [vmem:[#allocation8 + $0xd0] sm:$0xff] %v930
    %1033 = vst [vmem:[#allocation8 + $0xd8] sm:$0xff] %v945
    %1034 = vst [vmem:[#allocation8 + $0xe0] sm:$0xff] %v960
    %1035 = vst [vmem:[#allocation8 + $0xe8] sm:$0xff] %v975
    %1036 = vst [vmem:[#allocation8 + $0xf0] sm:$0xff] %v990
    %1037 = vst [vmem:[#allocation8 + $0xf8] sm:$0xff] %v1005
    // Predicated region
    $region34: #{tpu_custom_call.1} parent=1 // pred_check
      _
    $region35: #{tpu_custom_call.1} parent=1 // pred_check_branch
      %1039 = sbr.rel (0) target = $region37
    $region36: #{tpu_custom_call.1} parent=1 // pred_region
      %1041 = vsyncadd [#allocation4], 0
      %s1042 = sshll.u32 [#allocation8], 4
      %s1043 = int_to_ptr.vmem [resolvable:$true] %s1042
      %s1044 = sshll.u32 %s5, 4
      %s1045 = int_to_ptr.hbm [resolvable:$true] %s1044
      %1050 = dma.vmem_to_hbm [thread:$0]  %s1043, 4096, %s1045, [#allocation4], 128, 128, 8
    $region37: #{tpu_custom_call.1} parent=1 // pred_fallthru
      _
    // Predicated region
    $region38: #{tpu_custom_call.1} parent=1 // pred_check
      _
    $region39: #{tpu_custom_call.1} parent=1 // pred_check_branch
      %1052 = sbr.rel (0) target = $region41
    $region40: #{tpu_custom_call.1} parent=1 // pred_region
      %1054 = dma.done [#allocation4], 4096
    $region41: #{tpu_custom_call.1} parent=1 // pred_fallthru
      _
    %1055 = vsyncpa [#allocation3], 1
    %1056 = vsyncpa [#allocation6], 1
    %1057 = vsyncpa [#allocation4], 1

</llo_original>
